<compile_context>
chip_gen: v5e
topology: v5e:2x2
jax: 0.10.0
libtpu: 0.0.40
codegen_flags: <defaults>
</compile_context>

<pallas_src>
import functools

import jax
import jax.numpy as jnp
import numpy as np
from jax.experimental import pallas as pl
from jax.experimental.pallas import tpu as pltpu


def _round_up(a, b):
    return -(-a // b) * b


def _conv_image_kernel(x_ref, w_ref, b_ref, o_ref, *, kh, kw, cin_pad, wp, l_out):
    """Dense (stride-1) conv over one zero-padded image, flipped GEMM.

    x_ref: (Cin_pad, LX)          flat padded image, f32 (lanes = spatial)
    w_ref: (Cout, KH*KW*Cin_pad)  folded + pre-transposed weights, f32, resident
    b_ref: (Cout, 1)              bias, f32, resident
    o_ref: (Cout, L_out)          lane-dense dense-conv output (cols = y*Wp + x)
    """
    # im2col by lane shifts: tap (i, j) is a static, contiguous lane-axis slice
    # of the flat image — no strided sublane slicing, no tiled-dim reshapes.
    taps = []
    for i in range(kh):
        for j in range(kw):
            s = i * wp + j
            taps.append(x_ref[:, s:s + l_out])        # (Cin_pad, L_out)
    patches = jnp.concatenate(taps, axis=0)           # (KH*KW*Cin_pad, L_out)

    # Single folded MXU matmul emitting (Cout, L_out) directly (lane-dense);
    # f32 operands / f32 accumulation.
    res = jax.lax.dot_general(
        w_ref[...], patches,
        dimension_numbers=(((1,), (0,)), ((), ())),
        preferred_element_type=jnp.float32)            # (Cout, L_out)

    o_ref[...] = jnp.maximum(res + b_ref[...], 0.0).astype(o_ref.dtype)


def spectral_normalize(weight_oihw, u, eps=1e-12):
    """torch.nn.utils.spectral_norm (dim=0, n_power_iterations=1, training-mode
    forward).  F.normalize clamps the denominator at eps (max(norm, eps))."""
    cout = weight_oihw.shape[0]
    w_mat = weight_oihw.reshape(cout, -1)
    v = w_mat.T @ u
    v = v / jnp.maximum(jnp.linalg.norm(v), eps)
    u_new = w_mat @ v
    u_new = u_new / jnp.maximum(jnp.linalg.norm(u_new), eps)
    sigma = u_new @ (w_mat @ v)
    # TODO(synk): PyTorch updates the 'u' buffer in place on training forwards;
    # a training loop should thread u_new back out of this function.
    return weight_oihw / sigma


@functools.partial(jax.jit, static_argnames=("stride", "padding"))
def conv2d_block_forward(x_nchw, weight_oihw, bias, u, *, stride=1, padding=1):
    """Conv2dBlock.forward: ZeroPad2d(padding) -> SN-Conv2d(stride) -> ReLU."""
    w_sn = spectral_normalize(weight_oihw, u)          # param-sized prework
    cout, cin, kh, kw = w_sn.shape
    n, _, h, w = x_nchw.shape

    hp, wp = h + 2 * padding, w + 2 * padding
    ho = (hp - kh) // stride + 1
    wo = (wp - kw) // stride + 1
    ho_d = hp - kh + 1                                  # dense stride-1 output rows
    cin_pad = _round_up(cin, 8)                         # sublane-aligned tap blocks
    kdim = kh * kw * cin_pad
    l_out = _round_up(ho_d * wp, 128)                   # lane-dense kernel output width
    lx = (kh - 1) * wp + (kw - 1) + l_out               # flat padded-image width

    # Activation stays NCHW / f32: only a zero-pad + (free) flatten feeds the
    # kernel's (Cin_pad, Hp*Wp+tail) lane-major layout.  No transpose, no cast.
    # TODO(synk): for large Hp*Wp, fuse the pad into the kernel (zero-init VMEM
    # scratch) and double-buffer band_h-row halo windows via pl.ANY + DMA.
    xs = jnp.pad(x_nchw.astype(jnp.float32),
                 ((0, 0), (0, cin_pad - cin),
                  (padding, padding), (padding, padding)))      # (N, Cin_pad, Hp, Wp)
    xflat = xs.reshape(n, cin_pad, hp * wp)
    xflat = jnp.pad(xflat, ((0, 0), (0, 0), (0, lx - hp * wp)))  # (N, Cin_pad, LX)

    # Weights: (O,I,KH,KW) -> zero-pad I -> (O,KH,KW,Ipad) -> (O, KH*KW*Ipad),
    # pre-transposed so the MXU emits a lane-dense (Cout, M) result directly.
    w_p = jnp.pad(w_sn.astype(jnp.float32),
                  ((0, 0), (0, cin_pad - cin), (0, 0), (0, 0)))
    w2 = jnp.transpose(w_p, (0, 2, 3, 1)).reshape(cout, kdim)
    b2 = bias.reshape(cout, 1).astype(jnp.float32)

    # Generation-aware VMEM limit, estimated with lane/sublane-padded tiles and
    # in-kernel temporaries (taps, patches, matmul result).
    f32b = 4
    rows_x, lanes_x = _round_up(cin_pad, 8), _round_up(lx, 128)
    rows_w, lanes_w = _round_up(cout, 8), _round_up(kdim, 128)
    rows_o = _round_up(cout, 8)
    vmem_est = (2 * rows_x * lanes_x * f32b                 # double-buffered image
                + 2 * rows_w * lanes_w * f32b               # resident weights
                + 2 * 8 * 128 * f32b                        # bias
                + 2 * rows_o * l_out * f32b                 # double-buffered output
                + (kh * kw * rows_x + _round_up(kdim, 8) + rows_o) * l_out * f32b)
    try:
        vmem_cap = pltpu.get_tpu_info().vmem_capacity_bytes
    except Exception:
        vmem_cap = 64 << 20
    vmem_limit = int(min(0.75 * vmem_cap, max(32 << 20, 4 * vmem_est)))

    cost = pl.CostEstimate(
        flops=2 * n * cout * cin * kh * kw * ho_d * wp,
        transcendentals=0,
        bytes_accessed=int((xflat.size + w2.size + b2.size + n * cout * l_out) * f32b),
    )

    dense = pl.pallas_call(
        functools.partial(_conv_image_kernel, kh=kh, kw=kw, cin_pad=cin_pad,
                          wp=wp, l_out=l_out),
        out_shape=jax.ShapeDtypeStruct((n, cout, l_out), jnp.float32),
        grid_spec=pltpu.PrefetchScalarGridSpec(
            num_scalar_prefetch=0,
            grid=(n,),
            in_specs=[
                # Per-batch flat image; lanes carry spatial (not Cin).
                pl.BlockSpec((None, cin_pad, lx), lambda nb: (nb, 0, 0)),
                # Weights / bias: constant index_map -> fetched once, resident.
                pl.BlockSpec((cout, kdim), lambda nb: (0, 0)),
                pl.BlockSpec((cout, 1), lambda nb: (0, 0)),
            ],
            out_specs=pl.BlockSpec((None, cout, l_out), lambda nb: (nb, 0, 0)),
        ),
        compiler_params=pltpu.CompilerParams(
            dimension_semantics=("parallel",),
            vmem_limit_bytes=vmem_limit,
        ),
        cost_estimate=cost,
    )(xflat, w2, b2)

    # Kernel output columns are p = y*Wp + x of the dense stride-1 conv over the
    # padded grid; reshape (free) and take the valid / strided window.
    dense = dense[:, :, : ho_d * wp].reshape(n, cout, ho_d, wp)
    out = dense[:, :, : (ho - 1) * stride + 1 : stride,
                : (wo - 1) * stride + 1 : stride]          # (N, Cout, Ho, Wo)
    return out.astype(x_nchw.dtype)


if __name__ == "__main__":
    # Small shapes consistent with Conv2dBlock defaults.
    N, CIN, COUT = 2, 4, 8
    H = W = 16
    K, STRIDE, PAD = 3, 1, 1

    key = jax.random.PRNGKey(0)
    kx, kw_, kb, ku = jax.random.split(key, 4)

    x = jax.random.normal(kx, (N, CIN, H, W), dtype=jnp.float32)
    weight = jax.random.normal(kw_, (COUT, CIN, K, K), dtype=jnp.float32) * 0.1
    bias = jax.random.normal(kb, (COUT,), dtype=jnp.float32) * 0.1
    # spectral_norm 'u' buffer (torch inits randomly; deterministic here).
    u0 = jax.random.normal(ku, (COUT,), dtype=jnp.float32)
    u0 = u0 / jnp.maximum(jnp.linalg.norm(u0), 1e-12)

    out = conv2d_block_forward(x, weight, bias, u0, stride=STRIDE, padding=PAD)
    out = jax.block_until_ready(out)

    # Plain-JAX f32 reference (same spectral-norm prework).
    w_sn = spectral_normalize(weight, u0)
    ref = jax.lax.conv_general_dilated(
        x, w_sn, window_strides=(STRIDE, STRIDE),
        padding=[(PAD, PAD), (PAD, PAD)],
        dimension_numbers=("NCHW", "OIHW", "NCHW"))
    ref = jnp.maximum(ref + bias[None, :, None, None], 0.0)

    assert out.shape == (N, COUT, H, W), out.shape
    np.testing.assert_allclose(np.asarray(out), np.asarray(ref),
                               rtol=1e-4, atol=1e-4)
    print("KERNEL_OK")
</pallas_src>

<mosaic_0001>
module attributes {stable_mosaic.version = 11 : i64} {
  func.func @_conv_image_kernel(%arg0: i32, %arg1: memref<1x8x422xf32, #tpu.memory_space<vmem>>, %arg2: memref<8x72xf32, #tpu.memory_space<vmem>>, %arg3: memref<8x1xf32, #tpu.memory_space<vmem>>, %arg4: memref<1x8x384xf32, #tpu.memory_space<vmem>>) attributes {dimension_semantics = [#tpu.dimension_semantics<parallel>], iteration_bounds = array<i64: 2>, scalar_prefetch = 0 : i64, scratch_operands = 0 : i64, tpu.core_type = #tpu.core_type<tc>, window_params = [{transform_indices = @transform_0, window_bounds = array<i64: 1, 8, 422>}, {pipeline_mode = #tpu.pipeline_mode<synchronous>, transform_indices = @transform_1, window_bounds = array<i64: 8, 72>}, {pipeline_mode = #tpu.pipeline_mode<synchronous>, transform_indices = @transform_2, window_bounds = array<i64: 8, 1>}, {transform_indices = @transform_3, window_bounds = array<i64: 1, 8, 384>}]} {
    %c0 = arith.constant 0 : index
    %c0_0 = arith.constant 0 : index
    %c0_1 = arith.constant 0 : index
    %0 = vector.load %arg1[%c0, %c0_0, %c0_1] : memref<1x8x422xf32, #tpu.memory_space<vmem>>, vector<1x8x384xf32>
    %1 = vector.shape_cast %0 : vector<1x8x384xf32> to vector<8x384xf32>
    %c0_2 = arith.constant 0 : index
    %c0_3 = arith.constant 0 : index
    %c1 = arith.constant 1 : index
    %2 = vector.load %arg1[%c0_2, %c0_3, %c1] : memref<1x8x422xf32, #tpu.memory_space<vmem>>, vector<1x8x384xf32>
    %3 = vector.shape_cast %2 : vector<1x8x384xf32> to vector<8x384xf32>
    %c0_4 = arith.constant 0 : index
    %c0_5 = arith.constant 0 : index
    %c2 = arith.constant 2 : index
    %4 = vector.load %arg1[%c0_4, %c0_5, %c2] : memref<1x8x422xf32, #tpu.memory_space<vmem>>, vector<1x8x384xf32>
    %5 = vector.shape_cast %4 : vector<1x8x384xf32> to vector<8x384xf32>
    %c0_6 = arith.constant 0 : index
    %c0_7 = arith.constant 0 : index
    %c18 = arith.constant 18 : index
    %6 = vector.load %arg1[%c0_6, %c0_7, %c18] : memref<1x8x422xf32, #tpu.memory_space<vmem>>, vector<1x8x384xf32>
    %7 = vector.shape_cast %6 : vector<1x8x384xf32> to vector<8x384xf32>
    %c0_8 = arith.constant 0 : index
    %c0_9 = arith.constant 0 : index
    %c19 = arith.constant 19 : index
    %8 = vector.load %arg1[%c0_8, %c0_9, %c19] : memref<1x8x422xf32, #tpu.memory_space<vmem>>, vector<1x8x384xf32>
    %9 = vector.shape_cast %8 : vector<1x8x384xf32> to vector<8x384xf32>
    %c0_10 = arith.constant 0 : index
    %c0_11 = arith.constant 0 : index
    %c20 = arith.constant 20 : index
    %10 = vector.load %arg1[%c0_10, %c0_11, %c20] : memref<1x8x422xf32, #tpu.memory_space<vmem>>, vector<1x8x384xf32>
    %11 = vector.shape_cast %10 : vector<1x8x384xf32> to vector<8x384xf32>
    %c0_12 = arith.constant 0 : index
    %c0_13 = arith.constant 0 : index
    %c36 = arith.constant 36 : index
    %12 = vector.load %arg1[%c0_12, %c0_13, %c36] : memref<1x8x422xf32, #tpu.memory_space<vmem>>, vector<1x8x384xf32>
    %13 = vector.shape_cast %12 : vector<1x8x384xf32> to vector<8x384xf32>
    %c0_14 = arith.constant 0 : index
    %c0_15 = arith.constant 0 : index
    %c37 = arith.constant 37 : index
    %14 = vector.load %arg1[%c0_14, %c0_15, %c37] : memref<1x8x422xf32, #tpu.memory_space<vmem>>, vector<1x8x384xf32>
    %15 = vector.shape_cast %14 : vector<1x8x384xf32> to vector<8x384xf32>
    %c0_16 = arith.constant 0 : index
    %c0_17 = arith.constant 0 : index
    %c38 = arith.constant 38 : index
    %16 = vector.load %arg1[%c0_16, %c0_17, %c38] : memref<1x8x422xf32, #tpu.memory_space<vmem>>, vector<1x8x384xf32>
    %17 = vector.shape_cast %16 : vector<1x8x384xf32> to vector<8x384xf32>
    %18 = tpu.concatenate %1, %3, %5, %7, %9, %11, %13, %15, %17 in 0 : vector<8x384xf32>, vector<8x384xf32>, vector<8x384xf32>, vector<8x384xf32>, vector<8x384xf32>, vector<8x384xf32>, vector<8x384xf32>, vector<8x384xf32>, vector<8x384xf32> -> vector<72x384xf32>
    %c0_18 = arith.constant 0 : index
    %c0_19 = arith.constant 0 : index
    %19 = vector.load %arg2[%c0_18, %c0_19] : memref<8x72xf32, #tpu.memory_space<vmem>>, vector<8x72xf32>
    %cst = arith.constant dense<0.000000e+00> : vector<8x384xf32>
    %20 = tpu.matmul %19, %18, %cst {dimension_numbers = #tpu.dot_dimension_numbers<[1], [0], [0], [1], [0, 0, 1, 1], [], []>} : vector<8x72xf32>, vector<72x384xf32>, vector<8x384xf32> -> vector<8x384xf32>
    %c0_20 = arith.constant 0 : index
    %c0_21 = arith.constant 0 : index
    %21 = vector.load %arg3[%c0_20, %c0_21] : memref<8x1xf32, #tpu.memory_space<vmem>>, vector<8x1xf32>
    %22 = vector.broadcast %21 : vector<8x1xf32> to vector<8x384xf32>
    %23 = arith.addf %20, %22 : vector<8x384xf32>
    %cst_22 = arith.constant 0.000000e+00 : f32
    %24 = vector.broadcast %cst_22 : f32 to vector<8x384xf32>
    %25 = arith.maximumf %23, %24 : vector<8x384xf32>
    %c0_23 = arith.constant 0 : index
    %c0_24 = arith.constant 0 : index
    %c0_25 = arith.constant 0 : index
    %26 = vector.load %arg4[%c0_23, %c0_24, %c0_25] : memref<1x8x384xf32, #tpu.memory_space<vmem>>, vector<1x8x384xf32>
    %27 = vector.shape_cast %26 : vector<1x8x384xf32> to vector<8x384xf32>
    %28 = vector.shape_cast %25 : vector<8x384xf32> to vector<1x8x384xf32>
    tpu.vector_store %arg4[%c0_23, %c0_24, %c0_25], %28 {strides = array<i32>} : memref<1x8x384xf32, #tpu.memory_space<vmem>>, vector<1x8x384xf32>,
    return
  }
  func.func @transform_0(%arg0: i32) -> (i32, i32, i32) {
    %c0_i32 = arith.constant 0 : i32
    %c0_i32_0 = arith.constant 0 : i32
    %c0_i32_1 = arith.constant 0 : i32
    return %arg0, %c0_i32, %c0_i32_0 : i32, i32, i32
  }
  func.func @transform_1(%arg0: i32) -> (i32, i32) {
    %c0_i32 = arith.constant 0 : i32
    %c0_i32_0 = arith.constant 0 : i32
    %c0_i32_1 = arith.constant 0 : i32
    return %c0_i32, %c0_i32_0 : i32, i32
  }
  func.func @transform_2(%arg0: i32) -> (i32, i32) {
    %c0_i32 = arith.constant 0 : i32
    %c0_i32_0 = arith.constant 0 : i32
    %c0_i32_1 = arith.constant 0 : i32
    return %c0_i32, %c0_i32_0 : i32, i32
  }
  func.func @transform_3(%arg0: i32) -> (i32, i32, i32) {
    %c0_i32 = arith.constant 0 : i32
    %c0_i32_0 = arith.constant 0 : i32
    %c0_i32_1 = arith.constant 0 : i32
    return %arg0, %c0_i32, %c0_i32_0 : i32, i32, i32
  }
}

</mosaic_0001>

<llo_original>
// kernel: conv2d_block_forward.1
$region0: #{conv2d_block_forward.1}
  #allocation0 [shape = 'u32[]', space=smem, size = 0x4, offset = 0x4, fixed_abs, tag = 'smem constant byte address 0x4 - core index']
  #allocation1 [shape = 'u32[72,128]{1,0:T(1,128)}', space=vmem, size = 0x9000, scoped, tag = 'internal scratch']
  %s0 = inlined_call_operand.vmem [shape: f32[2,8,422], index: 0, kind: input, shape index: {}]
  %s1 = inlined_call_operand.vmem [shape: f32[8,72], index: 1, kind: input, shape index: {}]
  %s2 = inlined_call_operand.vmem [shape: f32[8,1], index: 2, kind: input, shape index: {}]
  %s3 = inlined_call_operand.vmem [shape: f32[2,8,384], index: 3, kind: output, shape index: {}]
  %s4 = sld [smem:[#allocation0]]
  $region45: #{conv2d_block_forward.1} parent=0
    _
  %s6 = ssub.s32 1, %s4
  %s7 = scalar_select 0, %s6, %s4
  loop: start=0, step=1, limit=4
  $region2: #{conv2d_block_forward.1} parent=0 // loop_pre_header
    _
  $region3: #{conv2d_block_forward.1} parent=0 // loop_header
    %s9 = sphi 0, %s13
    %p10 = scmp.ge.s32.totalorder %s9, 4
    %s19 = sphi 0, %s21
    %s22 = sphi 0, %s19
    %s23 = sphi 0, %s22
    %s39 = sphi 0, %s23
    %s43 = sphi 0, %s43
    %s45 = sphi 0, %s43
    %s46 = sphi 0, %s45
    %s60 = sphi 0, %s46
    %s64 = sphi 0, %s64
    %s66 = sphi 0, %s64
    %s67 = sphi 0, %s66
    %s81 = sphi 0, %s67
    %s87 = sphi 0, %s89
    %s90 = sphi 0, %s87
    %s91 = sphi 0, %s90
    %s107 = sphi 0, %s91
  $region4: #{conv2d_block_forward.1} parent=0 // loop_header_branch
    %12 = sbr.rel (%p10) target = $region8
  $region5: #{conv2d_block_forward.1} parent=0 // loop_body
    %s14 = ssub.s32 %s9, 1
    %s15 = ssub.s32 %s9, 2
    %s16 = sadd.s32 %s9, 1
    %s17 = ssub.s32 %s9, %s16
    %p18 = scmp.eq.s32.totalorder %s17, 0
    %s20 = sadd.s32 %s19, 1
    %s21 = scalar_select %p18, %s19, %s20
    %p24 = pneg %p18
    %p25 = scmp.eq.s32.totalorder %s9, 1
    %p26 = por %p24, %p25
    %p27 = scmp.ne.s32.totalorder %s19, %s22
    %p28 = scmp.eq.s32.totalorder %s9, 0
    %p29 = por %p27, %p28
    %p30 = scmp.ne.s32.totalorder %s19, %s22
    %p31 = scmp.eq.s32.totalorder %s14, 1
    %p32 = por %p30, %p31
    %p33 = scmp.ne.s32.totalorder %s22, %s23
    %p34 = scmp.eq.s32.totalorder %s14, 0
    %p35 = por %p33, %p34
    %p36 = scmp.ne.s32.totalorder %s22, %s23
    %p37 = scmp.eq.s32.totalorder %s15, 1
    %p38 = por %p36, %p37
    %p40 = scmp.ne.s32.totalorder %s23, %s39
    %p41 = scmp.eq.s32.totalorder %s15, 0
    %p42 = por %p40, %p41
    %s44 = sadd.s32 %s43, 1
    %p47 = scmp.eq.s32.totalorder %s9, 1
    %p48 = scmp.ne.s32.totalorder %s43, %s45
    %p49 = scmp.eq.s32.totalorder %s9, 0
    %p50 = por %p48, %p49
    %p51 = scmp.ne.s32.totalorder %s43, %s45
    %p52 = scmp.eq.s32.totalorder %s14, 1
    %p53 = por %p51, %p52
    %p54 = scmp.ne.s32.totalorder %s45, %s46
    %p55 = scmp.eq.s32.totalorder %s14, 0
    %p56 = por %p54, %p55
    %p57 = scmp.ne.s32.totalorder %s45, %s46
    %p58 = scmp.eq.s32.totalorder %s15, 1
    %p59 = por %p57, %p58
    %p61 = scmp.ne.s32.totalorder %s46, %s60
    %p62 = scmp.eq.s32.totalorder %s15, 0
    %p63 = por %p61, %p62
    %s65 = sadd.s32 %s64, 1
    %p68 = scmp.eq.s32.totalorder %s9, 1
    %p69 = scmp.ne.s32.totalorder %s64, %s66
    %p70 = scmp.eq.s32.totalorder %s9, 0
    %p71 = por %p69, %p70
    %p72 = scmp.ne.s32.totalorder %s64, %s66
    %p73 = scmp.eq.s32.totalorder %s14, 1
    %p74 = por %p72, %p73
    %p75 = scmp.ne.s32.totalorder %s66, %s67
    %p76 = scmp.eq.s32.totalorder %s14, 0
    %p77 = por %p75, %p76
    %p78 = scmp.ne.s32.totalorder %s66, %s67
    %p79 = scmp.eq.s32.totalorder %s15, 1
    %p80 = por %p78, %p79
    %p82 = scmp.ne.s32.totalorder %s67, %s81
    %p83 = scmp.eq.s32.totalorder %s15, 0
    %p84 = por %p82, %p83
    %s85 = ssub.s32 %s9, %s16
    %p86 = scmp.eq.s32.totalorder %s85, 0
    %s88 = sadd.s32 %s87, 1
    %s89 = scalar_select %p86, %s87, %s88
    %p92 = pneg %p86
    %p93 = scmp.eq.s32.totalorder %s9, 1
    %p94 = por %p92, %p93
    %p95 = scmp.ne.s32.totalorder %s87, %s90
    %p96 = scmp.eq.s32.totalorder %s9, 0
    %p97 = por %p95, %p96
    %p98 = scmp.ne.s32.totalorder %s87, %s90
    %p99 = scmp.eq.s32.totalorder %s14, 1
    %p100 = por %p98, %p99
    %p101 = scmp.ne.s32.totalorder %s90, %s91
    %p102 = scmp.eq.s32.totalorder %s14, 0
    %p103 = por %p101, %p102
    %p104 = scmp.ne.s32.totalorder %s90, %s91
    %p105 = scmp.eq.s32.totalorder %s15, 1
    %p106 = por %p104, %p105
    %p108 = scmp.ne.s32.totalorder %s91, %s107
    %p109 = scmp.eq.s32.totalorder %s15, 0
    %p110 = por %p108, %p109
    %p111 = scmp.le.s32.totalorder 1, %s9
    %p112 = scmp.lt.s32.totalorder %s9, 3
    %p113 = pnand %p111, %p112
    %p114 = pneg %p113
    // Predicated region
    $region9: #{conv2d_block_forward.1} parent=5 // pred_check
      _
    $region10: #{conv2d_block_forward.1} parent=5 // pred_check_branch
      %116 = sbr.rel (%p113) target = $region12
    $region11: #{conv2d_block_forward.1} parent=5 // pred_region
      %s117 = ssub.s32 %s9, 1
      // Predicated region
      $region13: #{conv2d_block_forward.1} parent=11 // pred_check
        %p118 = pneg %p56
      $region14: #{conv2d_block_forward.1} parent=11 // pred_check_branch
        %120 = sbr.rel (%p118) target = $region16
      $region15: #{conv2d_block_forward.1} parent=11 // pred_region
        _
      $region16: #{conv2d_block_forward.1} parent=11 // pred_fallthru
        _
      // Predicated region
      $region17: #{conv2d_block_forward.1} parent=11 // pred_check
        %p121 = pneg %p77
      $region18: #{conv2d_block_forward.1} parent=11 // pred_check_branch
        %123 = sbr.rel (%p121) target = $region20
      $region19: #{conv2d_block_forward.1} parent=11 // pred_region
        _
      $region20: #{conv2d_block_forward.1} parent=11 // pred_fallthru
        _
    $region12: #{conv2d_block_forward.1} parent=5 // pred_fallthru
      _
    %p124 = scmp.lt.s32.totalorder %s9, 2
    // Predicated region
    $region21: #{conv2d_block_forward.1} parent=5 // pred_check
      %p125 = pneg %p124
    $region22: #{conv2d_block_forward.1} parent=5 // pred_check_branch
      %127 = sbr.rel (%p125) target = $region24
    $region23: #{conv2d_block_forward.1} parent=5 // pred_region
      // Predicated region
      $region25: #{conv2d_block_forward.1} parent=23 // pred_check
        %p128 = pneg %p29
      $region26: #{conv2d_block_forward.1} parent=23 // pred_check_branch
        %130 = sbr.rel (%p128) target = $region28
      $region27: #{conv2d_block_forward.1} parent=23 // pred_region
        %p131 = scmp.lt.s32.totalorder %s9, 1
        %s132 = scalar_select %p131, %s9, 1
        %s133 = smul.addr %s132, 4
        %s134 = smul.addr %s133, 8
        %s135 = scalar_lea.vmem %s0, %s134
      $region28: #{conv2d_block_forward.1} parent=23 // pred_fallthru
        _
    $region24: #{conv2d_block_forward.1} parent=5 // pred_fallthru
      _
    %p136 = scmp.le.s32.totalorder 1, %s9
    %p137 = scmp.lt.s32.totalorder %s9, 3
    %p138 = pnand %p136, %p137
    %p139 = pneg %p138
    // Predicated region
    $region29: #{conv2d_block_forward.1} parent=5 // pred_check
      _
    $region30: #{conv2d_block_forward.1} parent=5 // pred_check_branch
      %141 = sbr.rel (%p138) target = $region32
    $region31: #{conv2d_block_forward.1} parent=5 // pred_region
      %s142 = ssub.s32 %s9, 1
      %p143 = scmp.lt.s32.totalorder %s14, 1
      %s144 = scalar_select %p143, %s14, 1
      %s145 = smul.addr %s144, 4
      %s146 = smul.addr %s145, 8
      %s147 = scalar_lea.vmem %s0, %s146
      %p148 = pneg %p35
      %p149 = pneg %p32
      %p150 = pneg %p56
      %p151 = pneg %p53
      %p152 = pneg %p77
      %p153 = pneg %p74
      %p154 = pneg %p103
      %p155 = pneg %p100
      %p156 = scmp.lt.s32.totalorder %s14, 1
      %s157 = scalar_select %p156, %s14, 1
      %s158 = smul.addr %s157, 3
      %s159 = smul.addr %s158, 8
      %s160 = scalar_lea.vmem %s3, %s159
      %p161 = scmp.lt.s32.totalorder %s14, 1
      %s162 = scalar_select %p161, %s14, 1
      %s163 = smul.addr %s162, 4
      %s164 = smul.addr %s163, 8
      %s165 = scalar_lea.vmem %s0, %s164
      %p166 = scmp.lt.s32.totalorder %s14, 1
      %s167 = scalar_select %p166, %s14, 1
      %s168 = smul.addr %s167, 3
      %s169 = smul.addr %s168, 8
      %s170 = scalar_lea.vmem %s3, %s169
      %v171 = vld [vmem:[%s165] sm:$0xff]
      %v172 = vld [vmem:[%s165 + $0x8] sm:$0xff]
      %v173 = vld [vmem:[%s165 + $0x10] sm:$0xff]
      %v174 = vld [vmem:[%s165 + $0x18] sm:$0xff]
      %179 = vrot.lane.b32.xlu0 %v171, 127
      %v180 = vpop.permute.xlu0 %179
      %181 = vrot.lane.b32.xlu0 %v172, 127
      %v182 = vpop.permute.xlu0 %181
      %183 = vrot.lane.b32.xlu0 %v173, 127
      %v184 = vpop.permute.xlu0 %183
      %185 = vrot.lane.b32.xlu0 %v174, 127
      %v186 = vpop.permute.xlu0 %185
      %vm187 = vcmask 1039360
      %v188 = vsel %vm187, %v180, %v182
      %v189 = vsel %vm187, %v182, %v184
      %v190 = vsel %vm187, %v184, %v186
      %194 = vrot.lane.b32.xlu0 %v171, 126
      %v195 = vpop.permute.xlu0 %194
      %196 = vrot.lane.b32.xlu0 %v172, 126
      %v197 = vpop.permute.xlu0 %196
      %198 = vrot.lane.b32.xlu0 %v173, 126
      %v199 = vpop.permute.xlu0 %198
      %200 = vrot.lane.b32.xlu0 %v174, 126
      %v201 = vpop.permute.xlu0 %200
      %vm202 = vcmask 1031168
      %v203 = vsel %vm202, %v195, %v197
      %v204 = vsel %vm202, %v197, %v199
      %v205 = vsel %vm202, %v199, %v201
      %209 = vrot.lane.b32.xlu0 %v171, 110
      %v210 = vpop.permute.xlu0 %209
      %211 = vrot.lane.b32.xlu0 %v172, 110
      %v212 = vpop.permute.xlu0 %211
      %213 = vrot.lane.b32.xlu0 %v173, 110
      %v214 = vpop.permute.xlu0 %213
      %215 = vrot.lane.b32.xlu0 %v174, 110
      %v216 = vpop.permute.xlu0 %215
      %vm217 = vcmask 900096
      %v218 = vsel %vm217, %v210, %v212
      %v219 = vsel %vm217, %v212, %v214
      %v220 = vsel %vm217, %v214, %v216
      %224 = vrot.lane.b32.xlu0 %v171, 109
      %v225 = vpop.permute.xlu0 %224
      %226 = vrot.lane.b32.xlu0 %v172, 109
      %v227 = vpop.permute.xlu0 %226
      %228 = vrot.lane.b32.xlu0 %v173, 109
      %v229 = vpop.permute.xlu0 %228
      %230 = vrot.lane.b32.xlu0 %v174, 109
      %v231 = vpop.permute.xlu0 %230
      %vm232 = vcmask 891904
      %v233 = vsel %vm232, %v225, %v227
      %v234 = vsel %vm232, %v227, %v229
      %v235 = vsel %vm232, %v229, %v231
      %239 = vrot.lane.b32.xlu0 %v171, 108
      %v240 = vpop.permute.xlu0 %239
      %241 = vrot.lane.b32.xlu0 %v172, 108
      %v242 = vpop.permute.xlu0 %241
      %243 = vrot.lane.b32.xlu0 %v173, 108
      %v244 = vpop.permute.xlu0 %243
      %245 = vrot.lane.b32.xlu0 %v174, 108
      %v246 = vpop.permute.xlu0 %245
      %vm247 = vcmask 883712
      %v248 = vsel %vm247, %v240, %v242
      %v249 = vsel %vm247, %v242, %v244
      %v250 = vsel %vm247, %v244, %v246
      %254 = vrot.lane.b32.xlu0 %v171, 92
      %v255 = vpop.permute.xlu0 %254
      %256 = vrot.lane.b32.xlu0 %v172, 92
      %v257 = vpop.permute.xlu0 %256
      %258 = vrot.lane.b32.xlu0 %v173, 92
      %v259 = vpop.permute.xlu0 %258
      %260 = vrot.lane.b32.xlu0 %v174, 92
      %v261 = vpop.permute.xlu0 %260
      %vm262 = vcmask 752640
      %v263 = vsel %vm262, %v255, %v257
      %v264 = vsel %vm262, %v257, %v259
      %v265 = vsel %vm262, %v259, %v261
      %269 = vrot.lane.b32.xlu0 %v171, 91
      %v270 = vpop.permute.xlu0 %269
      %271 = vrot.lane.b32.xlu0 %v172, 91
      %v272 = vpop.permute.xlu0 %271
      %273 = vrot.lane.b32.xlu0 %v173, 91
      %v274 = vpop.permute.xlu0 %273
      %275 = vrot.lane.b32.xlu0 %v174, 91
      %v276 = vpop.permute.xlu0 %275
      %vm277 = vcmask 744448
      %v278 = vsel %vm277, %v270, %v272
      %v279 = vsel %vm277, %v272, %v274
      %v280 = vsel %vm277, %v274, %v276
      %284 = vrot.lane.b32.xlu0 %v171, 90
      %v285 = vpop.permute.xlu0 %284
      %286 = vrot.lane.b32.xlu0 %v172, 90
      %v287 = vpop.permute.xlu0 %286
      %288 = vrot.lane.b32.xlu0 %v173, 90
      %v289 = vpop.permute.xlu0 %288
      %290 = vrot.lane.b32.xlu0 %v174, 90
      %v291 = vpop.permute.xlu0 %290
      %vm292 = vcmask 736256
      %v293 = vsel %vm292, %v285, %v287
      %v294 = vsel %vm292, %v287, %v289
      %v295 = vsel %vm292, %v289, %v291
      %v299 = vld [vmem:[%s1] sm:$0xff]
      %v300 = vld [vmem:[%s2] sm:$0xff]
      %302 = vset.pattern.permute.xlu0 0
      %303 = vperm.xlu0 %302, %v300
      %v304 = vpop.permute.xlu0 %303
      %vm306 = vcmask 588800
      %v308 = vsel %vm306, %v299, 0
      %310 = vmatpush.msra.mxu0 0.0
      %311 = vmatpush.msra.mxu0 0.0
      %312 = vmatpush.msra.mxu0 0.0
      %313 = vmatpush.msra.mxu0 0.0
      %314 = vmatpush.msra.mxu0 0.0
      %315 = vmatpush.msra.mxu0 0.0
      %316 = vmatpush.msra.mxu0 0.0
      %317 = vmatpush.msra.mxu0 %v293
      %318 = vmatpush.msra.mxu0 %v278
      %319 = vmatpush.msra.mxu0 %v263
      %320 = vmatpush.msra.mxu0 %v248
      %321 = vmatpush.msra.mxu0 %v233
      %322 = vmatpush.msra.mxu0 %v218
      %323 = vmatpush.msra.mxu0 %v203
      %324 = vmatpush.msra.mxu0 %v188
      %325 = vmatpush.msra.mxu0 %v171
      %326 = vmatmul.f32.gmra.mxu0 %v308
      %v327 = vpop.f32.mrf.mxu0
      %v328 = vadd.f32 %v304, %v327
      %329 = vdwg.mxu0
      %330 = vmatpush.msra.mxu0 0.0
      %331 = vmatpush.msra.mxu0 0.0
      %332 = vmatpush.msra.mxu0 0.0
      %333 = vmatpush.msra.mxu0 0.0
      %334 = vmatpush.msra.mxu0 0.0
      %335 = vmatpush.msra.mxu0 0.0
      %336 = vmatpush.msra.mxu0 0.0
      %337 = vmatpush.msra.mxu0 %v294
      %338 = vmatpush.msra.mxu0 %v279
      %339 = vmatpush.msra.mxu0 %v264
      %340 = vmatpush.msra.mxu0 %v249
      %341 = vmatpush.msra.mxu0 %v234
      %342 = vmatpush.msra.mxu0 %v219
      %343 = vmatpush.msra.mxu0 %v204
      %344 = vmatpush.msra.mxu0 %v189
      %345 = vmatpush.msra.mxu0 %v172
      %346 = vmatmul.f32.gmra.mxu0 %v308
      %v347 = vpop.f32.mrf.mxu0
      %v348 = vadd.f32 %v304, %v347
      %349 = vdwg.mxu0
      %350 = vmatpush.msra.mxu0 0.0
      %351 = vmatpush.msra.mxu0 0.0
      %352 = vmatpush.msra.mxu0 0.0
      %353 = vmatpush.msra.mxu0 0.0
      %354 = vmatpush.msra.mxu0 0.0
      %355 = vmatpush.msra.mxu0 0.0
      %356 = vmatpush.msra.mxu0 0.0
      %357 = vmatpush.msra.mxu0 %v295
      %358 = vmatpush.msra.mxu0 %v280
      %359 = vmatpush.msra.mxu0 %v265
      %360 = vmatpush.msra.mxu0 %v250
      %361 = vmatpush.msra.mxu0 %v235
      %362 = vmatpush.msra.mxu0 %v220
      %363 = vmatpush.msra.mxu0 %v205
      %364 = vmatpush.msra.mxu0 %v190
      %365 = vmatpush.msra.mxu0 %v173
      %366 = vmatmul.f32.gmra.mxu0 %v308
      %v367 = vpop.f32.mrf.mxu0
      %v368 = vadd.f32 %v304, %v367
      %369 = vdwg.mxu0
      %v370 = vmax.f32 %v328, 0.0
      %v371 = vmax.f32 %v348, 0.0
      %v372 = vmax.f32 %v368, 0.0
      %373 = vst [vmem:[%s170] sm:$0xff] %v370
      %374 = vst [vmem:[%s170 + $0x8] sm:$0xff] %v371
      %375 = vst [vmem:[%s170 + $0x10] sm:$0xff] %v372
      %p376 = scmp.lt.s32.totalorder %s14, 1
      %s377 = scalar_select %p376, %s14, 1
      %s378 = smul.addr %s377, 3
      %s379 = smul.addr %s378, 8
      %s380 = scalar_lea.vmem %s3, %s379
      // Predicated region
      $region33: #{conv2d_block_forward.1} parent=31 // pred_check
        %p381 = pneg %p100
      $region34: #{conv2d_block_forward.1} parent=31 // pred_check_branch
        %383 = sbr.rel (%p381) target = $region36
      $region35: #{conv2d_block_forward.1} parent=31 // pred_region
        _
      $region36: #{conv2d_block_forward.1} parent=31 // pred_fallthru
        _
    $region32: #{conv2d_block_forward.1} parent=5 // pred_fallthru
      _
    %p384 = scmp.le.s32.totalorder 2, %s9
    // Predicated region
    $region37: #{conv2d_block_forward.1} parent=5 // pred_check
      %p385 = pneg %p384
    $region38: #{conv2d_block_forward.1} parent=5 // pred_check_branch
      %387 = sbr.rel (%p385) target = $region40
    $region39: #{conv2d_block_forward.1} parent=5 // pred_region
      %s388 = ssub.s32 %s9, 2
      // Predicated region
      $region41: #{conv2d_block_forward.1} parent=39 // pred_check
        %p389 = pneg %p106
      $region42: #{conv2d_block_forward.1} parent=39 // pred_check_branch
        %391 = sbr.rel (%p389) target = $region44
      $region43: #{conv2d_block_forward.1} parent=39 // pred_region
        %p392 = scmp.lt.s32.totalorder %s15, 1
        %s393 = scalar_select %p392, %s15, 1
        %s394 = smul.addr %s393, 3
        %s395 = smul.addr %s394, 8
        %s396 = scalar_lea.vmem %s3, %s395
      $region44: #{conv2d_block_forward.1} parent=39 // pred_fallthru
        _
    $region40: #{conv2d_block_forward.1} parent=5 // pred_fallthru
      _
  $region6: #{conv2d_block_forward.1} parent=0 // loop_footer
    %s13 = sadd.s32 1, %s9
  $region7: #{conv2d_block_forward.1} parent=0 // loop_footer_branch
    %8 = sbr.rel target = $region3
  $region8: #{conv2d_block_forward.1} parent=0 // loop_exit
    _

</llo_original>
